<compile_context>
chip_gen: v5e
topology: v5e:2x2
jax: 0.10.0
libtpu: 0.0.40
codegen_flags: <defaults>
</compile_context>

<pallas_src>
import functools
import math

import jax
import jax.numpy as jnp
from jax.experimental import pallas as pl
from jax.experimental.pallas import tpu as pltpu


def _round_up(v, m):
    return (v + m - 1) // m * m


# ---------------------------------------------------------------------------
# Pallas kernel: one (batch, patch-row) tile of the overlapping patch
# projection, computed as a sum over the ph*pw conv taps.
# ---------------------------------------------------------------------------
def _patch_proj_kernel(x_ref, w_ref, b_ref, o_ref, *, ph, pw, sh, sw, nx, e_pad):
    # x_ref: (1, sh*sw, Hd, Wd, C_pad)  space-to-depth image block (bf16)
    # w_ref: (ph*pw, C_pad, E_pad)      per-tap flattened conv weight (bf16)
    # b_ref: (1, E_pad)                 bias (f32)
    # o_ref: (1, 1, nx, E_pad)          one patch-row of outputs (f32)
    iy = pl.program_id(1)                         # patch-row index
    acc = jnp.zeros((nx, e_pad), jnp.float32)
    for dy in range(ph):                          # static, unrolled
        ry, qy = dy % sh, dy // sh
        for dx in range(pw):
            rx, qx = dx % sw, dx // sw
            # Contiguous slice of the (ry, rx)-decimated image: the nx patches
            # of patch-row iy at conv tap (dy, dx)  ->  (nx, C_pad), bf16.
            win = x_ref[0, ry * sw + rx, iy + qy, pl.ds(qx, nx), :]
            acc = acc + jnp.dot(win, w_ref[dy * pw + dx],
                                preferred_element_type=jnp.float32)
    o_ref[0, 0] = (acc + b_ref[...]).astype(o_ref.dtype)


def _patch_embed_forward(x, weight, bias, *, patch_size, stride_size):
    ph, pw = patch_size
    sh, sw = stride_size
    B, C, H, W = x.shape
    E = weight.shape[0]
    ny = (H - ph) // sh + 1
    nx = (W - pw) // sw + 1

    c_pad = _round_up(C, 8)       # align contraction dim to the sublane tile
    e_pad = _round_up(E, 128)     # lane-dense output stores
    hp, wp = _round_up(H, sh), _round_up(W, sw)
    hd, wd = hp // sh, wp // sw

    # ---- cheap host-side prep (fused under jit; NO data expansion) ---------
    # NCHW -> NHWC, zero-pad H/W/C, then space-to-depth by (sh, sw):
    #   x_s2d[b, ry*sw+rx, hq, wq, c] == x[b, c, hq*sh + ry, wq*sw + rx]
    x_nhwc = jnp.transpose(x, (0, 2, 3, 1))
    x_nhwc = jnp.pad(x_nhwc, ((0, 0), (0, hp - H), (0, wp - W), (0, c_pad - C)))
    x_s2d = (x_nhwc.reshape(B, hd, sh, wd, sw, c_pad)
             .transpose(0, 2, 4, 1, 3, 5)
             .reshape(B, sh * sw, hd, wd, c_pad)
             .astype(jnp.bfloat16))

    # weight (E, C, ph, pw) -> per-tap (ph*pw, C_pad, E_pad), bf16
    w_taps = jnp.transpose(weight, (2, 3, 1, 0)).reshape(ph * pw, C, E)
    w_taps = jnp.pad(w_taps, ((0, 0), (0, c_pad - C), (0, e_pad - E)))
    w_taps = w_taps.astype(jnp.bfloat16)

    b_pad = jnp.pad(bias.astype(jnp.float32), (0, e_pad - E)).reshape(1, e_pad)

    kernel = functools.partial(_patch_proj_kernel, ph=ph, pw=pw, sh=sh, sw=sw,
                               nx=nx, e_pad=e_pad)

    out = pl.pallas_call(
        kernel,
        out_shape=jax.ShapeDtypeStruct((B, ny, nx, e_pad), jnp.float32),
        grid=(B, ny),
        in_specs=[
            # Whole decimated image per batch element; grid-invariant along iy.
            pl.BlockSpec((1, sh * sw, hd, wd, c_pad),
                         lambda b, i: (b, 0, 0, 0, 0)),
            # Grid-invariant weight / bias blocks (stay resident in VMEM).
            pl.BlockSpec((ph * pw, c_pad, e_pad), lambda b, i: (0, 0, 0)),
            pl.BlockSpec((1, e_pad), lambda b, i: (0, 0)),
        ],
        out_specs=pl.BlockSpec((1, 1, nx, e_pad), lambda b, i: (b, i, 0, 0)),
        compiler_params=pltpu.CompilerParams(
            dimension_semantics=("parallel", "parallel")),
    )(x_s2d, w_taps, b_pad)

    # (B, ny, nx, E_pad) -> (B, num_patches, E)   (row-major y-then-x ordering,
    # identical to PyTorch's conv.flatten(2).transpose(1, 2))
    return out[..., :E].reshape(B, ny * nx, E)


# ---------------------------------------------------------------------------
# Module-equivalent wrapper
# ---------------------------------------------------------------------------
class PatchEmbedOverlapPallas:
    def __init__(self, img_size=16, patch_size=4, stride_size=2, in_chans=3,
                 embed_dim=32, key=None):
        to2 = lambda v: (v, v) if isinstance(v, int) else tuple(v)
        self.img_size = to2(img_size)
        self.patch_size = to2(patch_size)
        self.stride_size = to2(stride_size)
        self.in_chans = in_chans
        self.embed_dim = embed_dim
        self.num_y = (self.img_size[0] - self.patch_size[0]) // self.stride_size[0] + 1
        self.num_x = (self.img_size[1] - self.patch_size[1]) // self.stride_size[1] + 1
        self.num_patches = self.num_y * self.num_x

        ph, pw = self.patch_size
        if key is None:
            key = jax.random.PRNGKey(0)
        k_w, k_b = jax.random.split(key)
        # Matches the module's init: weight ~ N(0, sqrt(2 / (kh*kw*out_channels)))
        n = ph * pw * embed_dim
        self.weight = (jax.random.normal(k_w, (embed_dim, in_chans, ph, pw),
                                         dtype=jnp.float32)
                       * math.sqrt(2.0 / n))
        # Conv2d bias default: U(-1/sqrt(fan_in), 1/sqrt(fan_in))
        fan_in = in_chans * ph * pw
        bound = 1.0 / math.sqrt(fan_in)
        self.bias = jax.random.uniform(k_b, (embed_dim,), dtype=jnp.float32,
                                       minval=-bound, maxval=bound)

    def __call__(self, x):
        B, C, H, W = x.shape
        assert H == self.img_size[0] and W == self.img_size[1], (
            f"Input image size ({H}*{W}) doesn't match model "
            f"({self.img_size[0]}*{self.img_size[1]}).")
        assert C == self.in_chans
        return _patch_embed_forward(x, self.weight, self.bias,
                                    patch_size=self.patch_size,
                                    stride_size=self.stride_size)


def _reference(x, weight, bias, stride):
    # Pure-JAX reference: conv2d NCHW (same bf16 operand cast, fp32 accumulate)
    # + flatten(2).transpose(1, 2)
    y = jax.lax.conv_general_dilated(
        x.astype(jnp.bfloat16), weight.astype(jnp.bfloat16),
        window_strides=stride, padding="VALID",
        dimension_numbers=("NCHW", "OIHW", "NCHW"),
        preferred_element_type=jnp.float32)
    y = y + bias[None, :, None, None]
    B, E, ny, nx = y.shape
    return jnp.transpose(y.reshape(B, E, ny * nx), (0, 2, 1))


if __name__ == "__main__":
    key = jax.random.PRNGKey(0)
    k_in, k_params = jax.random.split(key)

    # Small shapes consistent with the module (overlapping patches: stride < patch)
    B, C, H, W = 2, 3, 16, 16
    mod = PatchEmbedOverlapPallas(img_size=16, patch_size=4, stride_size=2,
                                  in_chans=C, embed_dim=32, key=k_params)

    x = jax.random.normal(k_in, (B, C, H, W), dtype=jnp.float32)

    # One jit: space-to-depth prep + pallas kernel + slice/reshape epilogue.
    fwd = jax.jit(mod.__call__)
    out = jax.block_until_ready(fwd(x))

    ref = _reference(x, mod.weight, mod.bias, mod.stride_size)
    assert out.shape == (B, mod.num_patches, mod.embed_dim)
    assert jnp.allclose(out, ref, atol=1e-2, rtol=1e-2), (
        float(jnp.max(jnp.abs(out - ref))))

    print("KERNEL_OK")
</pallas_src>

<mosaic_0001>
module attributes {stable_mosaic.version = 11 : i64} {
  func.func @_patch_proj_kernel(%arg0: i32, %arg1: i32, %arg2: memref<1x4x8x8x8xbf16, #tpu.memory_space<vmem>>, %arg3: memref<16x8x128xbf16, #tpu.memory_space<vmem>>, %arg4: memref<1x128xf32, #tpu.memory_space<vmem>>, %arg5: memref<1x1x7x128xf32, #tpu.memory_space<vmem>>) attributes {dimension_semantics = [#tpu.dimension_semantics<parallel>, #tpu.dimension_semantics<parallel>], iteration_bounds = array<i64: 2, 7>, scalar_prefetch = 0 : i64, scratch_operands = 0 : i64, tpu.core_type = #tpu.core_type<tc>, window_params = [{transform_indices = @transform_0, window_bounds = array<i64: 1, 4, 8, 8, 8>}, {pipeline_mode = #tpu.pipeline_mode<synchronous>, transform_indices = @transform_1, window_bounds = array<i64: 16, 8, 128>}, {pipeline_mode = #tpu.pipeline_mode<synchronous>, transform_indices = @transform_2, window_bounds = array<i64: 1, 128>}, {transform_indices = @transform_3, window_bounds = array<i64: 1, 1, 7, 128>}]} {
    %cst = arith.constant 0.000000e+00 : f32
    %0 = vector.broadcast %cst : f32 to vector<7x128xf32>
    %c0_i32 = arith.constant 0 : i32
    %1 = arith.addi %arg1, %c0_i32 : i32
    %c0 = arith.constant 0 : index
    %c0_0 = arith.constant 0 : index
    %2 = arith.index_cast %1 : i32 to index
    %c0_1 = arith.constant 0 : index
    %c0_2 = arith.constant 0 : index
    %3 = vector.load %arg2[%c0, %c0_0, %2, %c0_1, %c0_2] : memref<1x4x8x8x8xbf16, #tpu.memory_space<vmem>>, vector<1x1x1x7x8xbf16>
    %4 = vector.shape_cast %3 : vector<1x1x1x7x8xbf16> to vector<7x8xbf16>
    %c0_3 = arith.constant 0 : index
    %c0_4 = arith.constant 0 : index
    %c0_5 = arith.constant 0 : index
    %5 = vector.load %arg3[%c0_3, %c0_4, %c0_5] : memref<16x8x128xbf16, #tpu.memory_space<vmem>>, vector<1x8x128xbf16>
    %6 = vector.shape_cast %5 : vector<1x8x128xbf16> to vector<8x128xbf16>
    %cst_6 = arith.constant dense<0.000000e+00> : vector<7x128xf32>
    %7 = tpu.matmul %4, %6, %cst_6 {dimension_numbers = #tpu.dot_dimension_numbers<[1], [0], [0], [1], [0, 0, 1, 1], [], []>} : vector<7x8xbf16>, vector<8x128xbf16>, vector<7x128xf32> -> vector<7x128xf32>
    %8 = arith.addf %0, %7 : vector<7x128xf32>
    %c0_i32_7 = arith.constant 0 : i32
    %9 = arith.addi %arg1, %c0_i32_7 : i32
    %c0_8 = arith.constant 0 : index
    %c1 = arith.constant 1 : index
    %10 = arith.index_cast %9 : i32 to index
    %c0_9 = arith.constant 0 : index
    %c0_10 = arith.constant 0 : index
    %11 = vector.load %arg2[%c0_8, %c1, %10, %c0_9, %c0_10] : memref<1x4x8x8x8xbf16, #tpu.memory_space<vmem>>, vector<1x1x1x7x8xbf16>
    %12 = vector.shape_cast %11 : vector<1x1x1x7x8xbf16> to vector<7x8xbf16>
    %c1_11 = arith.constant 1 : index
    %c0_12 = arith.constant 0 : index
    %c0_13 = arith.constant 0 : index
    %13 = vector.load %arg3[%c1_11, %c0_12, %c0_13] : memref<16x8x128xbf16, #tpu.memory_space<vmem>>, vector<1x8x128xbf16>
    %14 = vector.shape_cast %13 : vector<1x8x128xbf16> to vector<8x128xbf16>
    %cst_14 = arith.constant dense<0.000000e+00> : vector<7x128xf32>
    %15 = tpu.matmul %12, %14, %cst_14 {dimension_numbers = #tpu.dot_dimension_numbers<[1], [0], [0], [1], [0, 0, 1, 1], [], []>} : vector<7x8xbf16>, vector<8x128xbf16>, vector<7x128xf32> -> vector<7x128xf32>
    %16 = arith.addf %8, %15 : vector<7x128xf32>
    %c0_i32_15 = arith.constant 0 : i32
    %17 = arith.addi %arg1, %c0_i32_15 : i32
    %c0_16 = arith.constant 0 : index
    %c0_17 = arith.constant 0 : index
    %18 = arith.index_cast %17 : i32 to index
    %c1_18 = arith.constant 1 : index
    %c0_19 = arith.constant 0 : index
    %19 = vector.load %arg2[%c0_16, %c0_17, %18, %c1_18, %c0_19] : memref<1x4x8x8x8xbf16, #tpu.memory_space<vmem>>, vector<1x1x1x7x8xbf16>
    %20 = vector.shape_cast %19 : vector<1x1x1x7x8xbf16> to vector<7x8xbf16>
    %c2 = arith.constant 2 : index
    %c0_20 = arith.constant 0 : index
    %c0_21 = arith.constant 0 : index
    %21 = vector.load %arg3[%c2, %c0_20, %c0_21] : memref<16x8x128xbf16, #tpu.memory_space<vmem>>, vector<1x8x128xbf16>
    %22 = vector.shape_cast %21 : vector<1x8x128xbf16> to vector<8x128xbf16>
    %cst_22 = arith.constant dense<0.000000e+00> : vector<7x128xf32>
    %23 = tpu.matmul %20, %22, %cst_22 {dimension_numbers = #tpu.dot_dimension_numbers<[1], [0], [0], [1], [0, 0, 1, 1], [], []>} : vector<7x8xbf16>, vector<8x128xbf16>, vector<7x128xf32> -> vector<7x128xf32>
    %24 = arith.addf %16, %23 : vector<7x128xf32>
    %c0_i32_23 = arith.constant 0 : i32
    %25 = arith.addi %arg1, %c0_i32_23 : i32
    %c0_24 = arith.constant 0 : index
    %c1_25 = arith.constant 1 : index
    %26 = arith.index_cast %25 : i32 to index
    %c1_26 = arith.constant 1 : index
    %c0_27 = arith.constant 0 : index
    %27 = vector.load %arg2[%c0_24, %c1_25, %26, %c1_26, %c0_27] : memref<1x4x8x8x8xbf16, #tpu.memory_space<vmem>>, vector<1x1x1x7x8xbf16>
    %28 = vector.shape_cast %27 : vector<1x1x1x7x8xbf16> to vector<7x8xbf16>
    %c3 = arith.constant 3 : index
    %c0_28 = arith.constant 0 : index
    %c0_29 = arith.constant 0 : index
    %29 = vector.load %arg3[%c3, %c0_28, %c0_29] : memref<16x8x128xbf16, #tpu.memory_space<vmem>>, vector<1x8x128xbf16>
    %30 = vector.shape_cast %29 : vector<1x8x128xbf16> to vector<8x128xbf16>
    %cst_30 = arith.constant dense<0.000000e+00> : vector<7x128xf32>
    %31 = tpu.matmul %28, %30, %cst_30 {dimension_numbers = #tpu.dot_dimension_numbers<[1], [0], [0], [1], [0, 0, 1, 1], [], []>} : vector<7x8xbf16>, vector<8x128xbf16>, vector<7x128xf32> -> vector<7x128xf32>
    %32 = arith.addf %24, %31 : vector<7x128xf32>
    %c0_i32_31 = arith.constant 0 : i32
    %33 = arith.addi %arg1, %c0_i32_31 : i32
    %c0_32 = arith.constant 0 : index
    %c2_33 = arith.constant 2 : index
    %34 = arith.index_cast %33 : i32 to index
    %c0_34 = arith.constant 0 : index
    %c0_35 = arith.constant 0 : index
    %35 = vector.load %arg2[%c0_32, %c2_33, %34, %c0_34, %c0_35] : memref<1x4x8x8x8xbf16, #tpu.memory_space<vmem>>, vector<1x1x1x7x8xbf16>
    %36 = vector.shape_cast %35 : vector<1x1x1x7x8xbf16> to vector<7x8xbf16>
    %c4 = arith.constant 4 : index
    %c0_36 = arith.constant 0 : index
    %c0_37 = arith.constant 0 : index
    %37 = vector.load %arg3[%c4, %c0_36, %c0_37] : memref<16x8x128xbf16, #tpu.memory_space<vmem>>, vector<1x8x128xbf16>
    %38 = vector.shape_cast %37 : vector<1x8x128xbf16> to vector<8x128xbf16>
    %cst_38 = arith.constant dense<0.000000e+00> : vector<7x128xf32>
    %39 = tpu.matmul %36, %38, %cst_38 {dimension_numbers = #tpu.dot_dimension_numbers<[1], [0], [0], [1], [0, 0, 1, 1], [], []>} : vector<7x8xbf16>, vector<8x128xbf16>, vector<7x128xf32> -> vector<7x128xf32>
    %40 = arith.addf %32, %39 : vector<7x128xf32>
    %c0_i32_39 = arith.constant 0 : i32
    %41 = arith.addi %arg1, %c0_i32_39 : i32
    %c0_40 = arith.constant 0 : index
    %c3_41 = arith.constant 3 : index
    %42 = arith.index_cast %41 : i32 to index
    %c0_42 = arith.constant 0 : index
    %c0_43 = arith.constant 0 : index
    %43 = vector.load %arg2[%c0_40, %c3_41, %42, %c0_42, %c0_43] : memref<1x4x8x8x8xbf16, #tpu.memory_space<vmem>>, vector<1x1x1x7x8xbf16>
    %44 = vector.shape_cast %43 : vector<1x1x1x7x8xbf16> to vector<7x8xbf16>
    %c5 = arith.constant 5 : index
    %c0_44 = arith.constant 0 : index
    %c0_45 = arith.constant 0 : index
    %45 = vector.load %arg3[%c5, %c0_44, %c0_45] : memref<16x8x128xbf16, #tpu.memory_space<vmem>>, vector<1x8x128xbf16>
    %46 = vector.shape_cast %45 : vector<1x8x128xbf16> to vector<8x128xbf16>
    %cst_46 = arith.constant dense<0.000000e+00> : vector<7x128xf32>
    %47 = tpu.matmul %44, %46, %cst_46 {dimension_numbers = #tpu.dot_dimension_numbers<[1], [0], [0], [1], [0, 0, 1, 1], [], []>} : vector<7x8xbf16>, vector<8x128xbf16>, vector<7x128xf32> -> vector<7x128xf32>
    %48 = arith.addf %40, %47 : vector<7x128xf32>
    %c0_i32_47 = arith.constant 0 : i32
    %49 = arith.addi %arg1, %c0_i32_47 : i32
    %c0_48 = arith.constant 0 : index
    %c2_49 = arith.constant 2 : index
    %50 = arith.index_cast %49 : i32 to index
    %c1_50 = arith.constant 1 : index
    %c0_51 = arith.constant 0 : index
    %51 = vector.load %arg2[%c0_48, %c2_49, %50, %c1_50, %c0_51] : memref<1x4x8x8x8xbf16, #tpu.memory_space<vmem>>, vector<1x1x1x7x8xbf16>
    %52 = vector.shape_cast %51 : vector<1x1x1x7x8xbf16> to vector<7x8xbf16>
    %c6 = arith.constant 6 : index
    %c0_52 = arith.constant 0 : index
    %c0_53 = arith.constant 0 : index
    %53 = vector.load %arg3[%c6, %c0_52, %c0_53] : memref<16x8x128xbf16, #tpu.memory_space<vmem>>, vector<1x8x128xbf16>
    %54 = vector.shape_cast %53 : vector<1x8x128xbf16> to vector<8x128xbf16>
    %cst_54 = arith.constant dense<0.000000e+00> : vector<7x128xf32>
    %55 = tpu.matmul %52, %54, %cst_54 {dimension_numbers = #tpu.dot_dimension_numbers<[1], [0], [0], [1], [0, 0, 1, 1], [], []>} : vector<7x8xbf16>, vector<8x128xbf16>, vector<7x128xf32> -> vector<7x128xf32>
    %56 = arith.addf %48, %55 : vector<7x128xf32>
    %c0_i32_55 = arith.constant 0 : i32
    %57 = arith.addi %arg1, %c0_i32_55 : i32
    %c0_56 = arith.constant 0 : index
    %c3_57 = arith.constant 3 : index
    %58 = arith.index_cast %57 : i32 to index
    %c1_58 = arith.constant 1 : index
    %c0_59 = arith.constant 0 : index
    %59 = vector.load %arg2[%c0_56, %c3_57, %58, %c1_58, %c0_59] : memref<1x4x8x8x8xbf16, #tpu.memory_space<vmem>>, vector<1x1x1x7x8xbf16>
    %60 = vector.shape_cast %59 : vector<1x1x1x7x8xbf16> to vector<7x8xbf16>
    %c7 = arith.constant 7 : index
    %c0_60 = arith.constant 0 : index
    %c0_61 = arith.constant 0 : index
    %61 = vector.load %arg3[%c7, %c0_60, %c0_61] : memref<16x8x128xbf16, #tpu.memory_space<vmem>>, vector<1x8x128xbf16>
    %62 = vector.shape_cast %61 : vector<1x8x128xbf16> to vector<8x128xbf16>
    %cst_62 = arith.constant dense<0.000000e+00> : vector<7x128xf32>
    %63 = tpu.matmul %60, %62, %cst_62 {dimension_numbers = #tpu.dot_dimension_numbers<[1], [0], [0], [1], [0, 0, 1, 1], [], []>} : vector<7x8xbf16>, vector<8x128xbf16>, vector<7x128xf32> -> vector<7x128xf32>
    %64 = arith.addf %56, %63 : vector<7x128xf32>
    %c1_i32 = arith.constant 1 : i32
    %65 = arith.addi %arg1, %c1_i32 : i32
    %c0_63 = arith.constant 0 : index
    %c0_64 = arith.constant 0 : index
    %66 = arith.index_cast %65 : i32 to index
    %c0_65 = arith.constant 0 : index
    %c0_66 = arith.constant 0 : index
    %67 = vector.load %arg2[%c0_63, %c0_64, %66, %c0_65, %c0_66] : memref<1x4x8x8x8xbf16, #tpu.memory_space<vmem>>, vector<1x1x1x7x8xbf16>
    %68 = vector.shape_cast %67 : vector<1x1x1x7x8xbf16> to vector<7x8xbf16>
    %c8 = arith.constant 8 : index
    %c0_67 = arith.constant 0 : index
    %c0_68 = arith.constant 0 : index
    %69 = vector.load %arg3[%c8, %c0_67, %c0_68] : memref<16x8x128xbf16, #tpu.memory_space<vmem>>, vector<1x8x128xbf16>
    %70 = vector.shape_cast %69 : vector<1x8x128xbf16> to vector<8x128xbf16>
    %cst_69 = arith.constant dense<0.000000e+00> : vector<7x128xf32>
    %71 = tpu.matmul %68, %70, %cst_69 {dimension_numbers = #tpu.dot_dimension_numbers<[1], [0], [0], [1], [0, 0, 1, 1], [], []>} : vector<7x8xbf16>, vector<8x128xbf16>, vector<7x128xf32> -> vector<7x128xf32>
    %72 = arith.addf %64, %71 : vector<7x128xf32>
    %c1_i32_70 = arith.constant 1 : i32
    %73 = arith.addi %arg1, %c1_i32_70 : i32
    %c0_71 = arith.constant 0 : index
    %c1_72 = arith.constant 1 : index
    %74 = arith.index_cast %73 : i32 to index
    %c0_73 = arith.constant 0 : index
    %c0_74 = arith.constant 0 : index
    %75 = vector.load %arg2[%c0_71, %c1_72, %74, %c0_73, %c0_74] : memref<1x4x8x8x8xbf16, #tpu.memory_space<vmem>>, vector<1x1x1x7x8xbf16>
    %76 = vector.shape_cast %75 : vector<1x1x1x7x8xbf16> to vector<7x8xbf16>
    %c9 = arith.constant 9 : index
    %c0_75 = arith.constant 0 : index
    %c0_76 = arith.constant 0 : index
    %77 = vector.load %arg3[%c9, %c0_75, %c0_76] : memref<16x8x128xbf16, #tpu.memory_space<vmem>>, vector<1x8x128xbf16>
    %78 = vector.shape_cast %77 : vector<1x8x128xbf16> to vector<8x128xbf16>
    %cst_77 = arith.constant dense<0.000000e+00> : vector<7x128xf32>
    %79 = tpu.matmul %76, %78, %cst_77 {dimension_numbers = #tpu.dot_dimension_numbers<[1], [0], [0], [1], [0, 0, 1, 1], [], []>} : vector<7x8xbf16>, vector<8x128xbf16>, vector<7x128xf32> -> vector<7x128xf32>
    %80 = arith.addf %72, %79 : vector<7x128xf32>
    %c1_i32_78 = arith.constant 1 : i32
    %81 = arith.addi %arg1, %c1_i32_78 : i32
    %c0_79 = arith.constant 0 : index
    %c0_80 = arith.constant 0 : index
    %82 = arith.index_cast %81 : i32 to index
    %c1_81 = arith.constant 1 : index
    %c0_82 = arith.constant 0 : index
    %83 = vector.load %arg2[%c0_79, %c0_80, %82, %c1_81, %c0_82] : memref<1x4x8x8x8xbf16, #tpu.memory_space<vmem>>, vector<1x1x1x7x8xbf16>
    %84 = vector.shape_cast %83 : vector<1x1x1x7x8xbf16> to vector<7x8xbf16>
    %c10 = arith.constant 10 : index
    %c0_83 = arith.constant 0 : index
    %c0_84 = arith.constant 0 : index
    %85 = vector.load %arg3[%c10, %c0_83, %c0_84] : memref<16x8x128xbf16, #tpu.memory_space<vmem>>, vector<1x8x128xbf16>
    %86 = vector.shape_cast %85 : vector<1x8x128xbf16> to vector<8x128xbf16>
    %cst_85 = arith.constant dense<0.000000e+00> : vector<7x128xf32>
    %87 = tpu.matmul %84, %86, %cst_85 {dimension_numbers = #tpu.dot_dimension_numbers<[1], [0], [0], [1], [0, 0, 1, 1], [], []>} : vector<7x8xbf16>, vector<8x128xbf16>, vector<7x128xf32> -> vector<7x128xf32>
    %88 = arith.addf %80, %87 : vector<7x128xf32>
    %c1_i32_86 = arith.constant 1 : i32
    %89 = arith.addi %arg1, %c1_i32_86 : i32
    %c0_87 = arith.constant 0 : index
    %c1_88 = arith.constant 1 : index
    %90 = arith.index_cast %89 : i32 to index
    %c1_89 = arith.constant 1 : index
    %c0_90 = arith.constant 0 : index
    %91 = vector.load %arg2[%c0_87, %c1_88, %90, %c1_89, %c0_90] : memref<1x4x8x8x8xbf16, #tpu.memory_space<vmem>>, vector<1x1x1x7x8xbf16>
    %92 = vector.shape_cast %91 : vector<1x1x1x7x8xbf16> to vector<7x8xbf16>
    %c11 = arith.constant 11 : index
    %c0_91 = arith.constant 0 : index
    %c0_92 = arith.constant 0 : index
    %93 = vector.load %arg3[%c11, %c0_91, %c0_92] : memref<16x8x128xbf16, #tpu.memory_space<vmem>>, vector<1x8x128xbf16>
    %94 = vector.shape_cast %93 : vector<1x8x128xbf16> to vector<8x128xbf16>
    %cst_93 = arith.constant dense<0.000000e+00> : vector<7x128xf32>
    %95 = tpu.matmul %92, %94, %cst_93 {dimension_numbers = #tpu.dot_dimension_numbers<[1], [0], [0], [1], [0, 0, 1, 1], [], []>} : vector<7x8xbf16>, vector<8x128xbf16>, vector<7x128xf32> -> vector<7x128xf32>
    %96 = arith.addf %88, %95 : vector<7x128xf32>
    %c1_i32_94 = arith.constant 1 : i32
    %97 = arith.addi %arg1, %c1_i32_94 : i32
    %c0_95 = arith.constant 0 : index
    %c2_96 = arith.constant 2 : index
    %98 = arith.index_cast %97 : i32 to index
    %c0_97 = arith.constant 0 : index
    %c0_98 = arith.constant 0 : index
    %99 = vector.load %arg2[%c0_95, %c2_96, %98, %c0_97, %c0_98] : memref<1x4x8x8x8xbf16, #tpu.memory_space<vmem>>, vector<1x1x1x7x8xbf16>
    %100 = vector.shape_cast %99 : vector<1x1x1x7x8xbf16> to vector<7x8xbf16>
    %c12 = arith.constant 12 : index
    %c0_99 = arith.constant 0 : index
    %c0_100 = arith.constant 0 : index
    %101 = vector.load %arg3[%c12, %c0_99, %c0_100] : memref<16x8x128xbf16, #tpu.memory_space<vmem>>, vector<1x8x128xbf16>
    %102 = vector.shape_cast %101 : vector<1x8x128xbf16> to vector<8x128xbf16>
    %cst_101 = arith.constant dense<0.000000e+00> : vector<7x128xf32>
    %103 = tpu.matmul %100, %102, %cst_101 {dimension_numbers = #tpu.dot_dimension_numbers<[1], [0], [0], [1], [0, 0, 1, 1], [], []>} : vector<7x8xbf16>, vector<8x128xbf16>, vector<7x128xf32> -> vector<7x128xf32>
    %104 = arith.addf %96, %103 : vector<7x128xf32>
    %c1_i32_102 = arith.constant 1 : i32
    %105 = arith.addi %arg1, %c1_i32_102 : i32
    %c0_103 = arith.constant 0 : index
    %c3_104 = arith.constant 3 : index
    %106 = arith.index_cast %105 : i32 to index
    %c0_105 = arith.constant 0 : index
    %c0_106 = arith.constant 0 : index
    %107 = vector.load %arg2[%c0_103, %c3_104, %106, %c0_105, %c0_106] : memref<1x4x8x8x8xbf16, #tpu.memory_space<vmem>>, vector<1x1x1x7x8xbf16>
    %108 = vector.shape_cast %107 : vector<1x1x1x7x8xbf16> to vector<7x8xbf16>
    %c13 = arith.constant 13 : index
    %c0_107 = arith.constant 0 : index
    %c0_108 = arith.constant 0 : index
    %109 = vector.load %arg3[%c13, %c0_107, %c0_108] : memref<16x8x128xbf16, #tpu.memory_space<vmem>>, vector<1x8x128xbf16>
    %110 = vector.shape_cast %109 : vector<1x8x128xbf16> to vector<8x128xbf16>
    %cst_109 = arith.constant dense<0.000000e+00> : vector<7x128xf32>
    %111 = tpu.matmul %108, %110, %cst_109 {dimension_numbers = #tpu.dot_dimension_numbers<[1], [0], [0], [1], [0, 0, 1, 1], [], []>} : vector<7x8xbf16>, vector<8x128xbf16>, vector<7x128xf32> -> vector<7x128xf32>
    %112 = arith.addf %104, %111 : vector<7x128xf32>
    %c1_i32_110 = arith.constant 1 : i32
    %113 = arith.addi %arg1, %c1_i32_110 : i32
    %c0_111 = arith.constant 0 : index
    %c2_112 = arith.constant 2 : index
    %114 = arith.index_cast %113 : i32 to index
    %c1_113 = arith.constant 1 : index
    %c0_114 = arith.constant 0 : index
    %115 = vector.load %arg2[%c0_111, %c2_112, %114, %c1_113, %c0_114] : memref<1x4x8x8x8xbf16, #tpu.memory_space<vmem>>, vector<1x1x1x7x8xbf16>
    %116 = vector.shape_cast %115 : vector<1x1x1x7x8xbf16> to vector<7x8xbf16>
    %c14 = arith.constant 14 : index
    %c0_115 = arith.constant 0 : index
    %c0_116 = arith.constant 0 : index
    %117 = vector.load %arg3[%c14, %c0_115, %c0_116] : memref<16x8x128xbf16, #tpu.memory_space<vmem>>, vector<1x8x128xbf16>
    %118 = vector.shape_cast %117 : vector<1x8x128xbf16> to vector<8x128xbf16>
    %cst_117 = arith.constant dense<0.000000e+00> : vector<7x128xf32>
    %119 = tpu.matmul %116, %118, %cst_117 {dimension_numbers = #tpu.dot_dimension_numbers<[1], [0], [0], [1], [0, 0, 1, 1], [], []>} : vector<7x8xbf16>, vector<8x128xbf16>, vector<7x128xf32> -> vector<7x128xf32>
    %120 = arith.addf %112, %119 : vector<7x128xf32>
    %c1_i32_118 = arith.constant 1 : i32
    %121 = arith.addi %arg1, %c1_i32_118 : i32
    %c0_119 = arith.constant 0 : index
    %c3_120 = arith.constant 3 : index
    %122 = arith.index_cast %121 : i32 to index
    %c1_121 = arith.constant 1 : index
    %c0_122 = arith.constant 0 : index
    %123 = vector.load %arg2[%c0_119, %c3_120, %122, %c1_121, %c0_122] : memref<1x4x8x8x8xbf16, #tpu.memory_space<vmem>>, vector<1x1x1x7x8xbf16>
    %124 = vector.shape_cast %123 : vector<1x1x1x7x8xbf16> to vector<7x8xbf16>
    %c15 = arith.constant 15 : index
    %c0_123 = arith.constant 0 : index
    %c0_124 = arith.constant 0 : index
    %125 = vector.load %arg3[%c15, %c0_123, %c0_124] : memref<16x8x128xbf16, #tpu.memory_space<vmem>>, vector<1x8x128xbf16>
    %126 = vector.shape_cast %125 : vector<1x8x128xbf16> to vector<8x128xbf16>
    %cst_125 = arith.constant dense<0.000000e+00> : vector<7x128xf32>
    %127 = tpu.matmul %124, %126, %cst_125 {dimension_numbers = #tpu.dot_dimension_numbers<[1], [0], [0], [1], [0, 0, 1, 1], [], []>} : vector<7x8xbf16>, vector<8x128xbf16>, vector<7x128xf32> -> vector<7x128xf32>
    %128 = arith.addf %120, %127 : vector<7x128xf32>
    %c0_126 = arith.constant 0 : index
    %c0_127 = arith.constant 0 : index
    %129 = vector.load %arg4[%c0_126, %c0_127] : memref<1x128xf32, #tpu.memory_space<vmem>>, vector<1x128xf32>
    %130 = vector.broadcast %129 : vector<1x128xf32> to vector<7x128xf32>
    %131 = arith.addf %128, %130 : vector<7x128xf32>
    %c0_128 = arith.constant 0 : index
    %c0_129 = arith.constant 0 : index
    %c0_130 = arith.constant 0 : index
    %c0_131 = arith.constant 0 : index
    %132 = vector.load %arg5[%c0_128, %c0_129, %c0_130, %c0_131] : memref<1x1x7x128xf32, #tpu.memory_space<vmem>>, vector<1x1x7x128xf32>
    %133 = vector.shape_cast %132 : vector<1x1x7x128xf32> to vector<7x128xf32>
    %134 = vector.shape_cast %131 : vector<7x128xf32> to vector<1x1x7x128xf32>
    tpu.vector_store %arg5[%c0_128, %c0_129, %c0_130, %c0_131], %134 {strides = array<i32>} : memref<1x1x7x128xf32, #tpu.memory_space<vmem>>, vector<1x1x7x128xf32>,
    return
  }
  func.func @transform_0(%arg0: i32, %arg1: i32) -> (i32, i32, i32, i32, i32) {
    %c0_i32 = arith.constant 0 : i32
    %c0_i32_0 = arith.constant 0 : i32
    %c0_i32_1 = arith.constant 0 : i32
    %c0_i32_2 = arith.constant 0 : i32
    %c0_i32_3 = arith.constant 0 : i32
    return %arg0, %c0_i32, %c0_i32_0, %c0_i32_1, %c0_i32_2 : i32, i32, i32, i32, i32
  }
  func.func @transform_1(%arg0: i32, %arg1: i32) -> (i32, i32, i32) {
    %c0_i32 = arith.constant 0 : i32
    %c0_i32_0 = arith.constant 0 : i32
    %c0_i32_1 = arith.constant 0 : i32
    %c0_i32_2 = arith.constant 0 : i32
    return %c0_i32, %c0_i32_0, %c0_i32_1 : i32, i32, i32
  }
  func.func @transform_2(%arg0: i32, %arg1: i32) -> (i32, i32) {
    %c0_i32 = arith.constant 0 : i32
    %c0_i32_0 = arith.constant 0 : i32
    %c0_i32_1 = arith.constant 0 : i32
    return %c0_i32, %c0_i32_0 : i32, i32
  }
  func.func @transform_3(%arg0: i32, %arg1: i32) -> (i32, i32, i32, i32) {
    %c0_i32 = arith.constant 0 : i32
    %c0_i32_0 = arith.constant 0 : i32
    %c0_i32_1 = arith.constant 0 : i32
    return %arg0, %arg1, %c0_i32, %c0_i32_0 : i32, i32, i32, i32
  }
}

</mosaic_0001>

<llo_original>
// kernel: a_call__.1
$region0: #{a_call__.1}
  #allocation0 [shape = 'u32[]', space=smem, size = 0x4, offset = 0x4, fixed_abs, tag = 'smem constant byte address 0x4 - core index']
  #allocation1 [shape = 'u32[72,128]{1,0:T(1,128)}', space=vmem, size = 0x9000, scoped, tag = 'internal scratch']
  %s0 = inlined_call_operand.vmem [shape: bf16[2,4,8,8,8], index: 0, kind: input, shape index: {}]
  %s1 = inlined_call_operand.vmem [shape: bf16[16,8,128], index: 1, kind: input, shape index: {}]
  %s2 = inlined_call_operand.vmem [shape: f32[1,128], index: 2, kind: input, shape index: {}]
  %s3 = inlined_call_operand.vmem [shape: f32[2,7,7,128], index: 3, kind: output, shape index: {}]
  %s4 = sld [smem:[#allocation0]]
  $region45: #{a_call__.1} parent=0
    _
  %s6 = ssub.s32 1, %s4
  %s7 = scalar_select 0, %s6, %s4
  loop: start=0, step=1, limit=16
  $region2: #{a_call__.1} parent=0 // loop_pre_header
    _
  $region3: #{a_call__.1} parent=0 // loop_header
    %s9 = sphi 0, %s13
    %p10 = scmp.ge.s32.totalorder %s9, 16
    %s16 = sphi 0, %s28
    %s17 = sphi 0, %s24
    %s18 = sphi 0, %s16
    %s19 = sphi 0, %s17
    %s20 = sphi 0, %s18
    %s21 = sphi 0, %s19
    %s31 = sphi 0, %s33
    %s34 = sphi 0, %s31
    %s35 = sphi 0, %s34
    %s51 = sphi 0, %s35
    %s55 = sphi 0, %s55
    %s57 = sphi 0, %s55
    %s58 = sphi 0, %s57
    %s72 = sphi 0, %s58
    %s76 = sphi 0, %s76
    %s78 = sphi 0, %s76
    %s79 = sphi 0, %s78
    %s93 = sphi 0, %s79
    %s101 = sphi 0, %s103
    %s104 = sphi 0, %s101
    %s105 = sphi 0, %s104
    %s121 = sphi 0, %s105
  $region4: #{a_call__.1} parent=0 // loop_header_branch
    %12 = sbr.rel (%p10) target = $region8
  $region5: #{a_call__.1} parent=0 // loop_body
    %s14 = ssub.s32 %s9, 1
    %s15 = ssub.s32 %s9, 2
    %s22 = sadd.s32 1, %s17
    %p23 = scmp.ge.s32.totalorder %s22, 7
    %s24 = scalar_select %p23, 0, %s22
    %s25 = sadd.s32 1, %s16
    %s26 = scalar_select %p23, %s25, %s16
    %p27 = scmp.ge.s32.totalorder %s26, 2
    %s28 = scalar_select %p27, 0, %s26
    %s29 = ssub.s32 %s16, %s28
    %p30 = scmp.eq.s32.totalorder %s29, 0
    %s32 = sadd.s32 %s31, 1
    %s33 = scalar_select %p30, %s31, %s32
    %p36 = pneg %p30
    %p37 = scmp.eq.s32.totalorder %s9, 13
    %p38 = por %p36, %p37
    %p39 = scmp.ne.s32.totalorder %s31, %s34
    %p40 = scmp.eq.s32.totalorder %s9, 0
    %p41 = por %p39, %p40
    %p42 = scmp.ne.s32.totalorder %s31, %s34
    %p43 = scmp.eq.s32.totalorder %s14, 13
    %p44 = por %p42, %p43
    %p45 = scmp.ne.s32.totalorder %s34, %s35
    %p46 = scmp.eq.s32.totalorder %s14, 0
    %p47 = por %p45, %p46
    %p48 = scmp.ne.s32.totalorder %s34, %s35
    %p49 = scmp.eq.s32.totalorder %s15, 13
    %p50 = por %p48, %p49
    %p52 = scmp.ne.s32.totalorder %s35, %s51
    %p53 = scmp.eq.s32.totalorder %s15, 0
    %p54 = por %p52, %p53
    %s56 = sadd.s32 %s55, 1
    %p59 = scmp.eq.s32.totalorder %s9, 13
    %p60 = scmp.ne.s32.totalorder %s55, %s57
    %p61 = scmp.eq.s32.totalorder %s9, 0
    %p62 = por %p60, %p61
    %p63 = scmp.ne.s32.totalorder %s55, %s57
    %p64 = scmp.eq.s32.totalorder %s14, 13
    %p65 = por %p63, %p64
    %p66 = scmp.ne.s32.totalorder %s57, %s58
    %p67 = scmp.eq.s32.totalorder %s14, 0
    %p68 = por %p66, %p67
    %p69 = scmp.ne.s32.totalorder %s57, %s58
    %p70 = scmp.eq.s32.totalorder %s15, 13
    %p71 = por %p69, %p70
    %p73 = scmp.ne.s32.totalorder %s58, %s72
    %p74 = scmp.eq.s32.totalorder %s15, 0
    %p75 = por %p73, %p74
    %s77 = sadd.s32 %s76, 1
    %p80 = scmp.eq.s32.totalorder %s9, 13
    %p81 = scmp.ne.s32.totalorder %s76, %s78
    %p82 = scmp.eq.s32.totalorder %s9, 0
    %p83 = por %p81, %p82
    %p84 = scmp.ne.s32.totalorder %s76, %s78
    %p85 = scmp.eq.s32.totalorder %s14, 13
    %p86 = por %p84, %p85
    %p87 = scmp.ne.s32.totalorder %s78, %s79
    %p88 = scmp.eq.s32.totalorder %s14, 0
    %p89 = por %p87, %p88
    %p90 = scmp.ne.s32.totalorder %s78, %s79
    %p91 = scmp.eq.s32.totalorder %s15, 13
    %p92 = por %p90, %p91
    %p94 = scmp.ne.s32.totalorder %s79, %s93
    %p95 = scmp.eq.s32.totalorder %s15, 0
    %p96 = por %p94, %p95
    %s97 = ssub.s32 %s16, %s28
    %s98 = ssub.s32 %s17, %s24
    %s99 = sor.u32 %s97, %s98
    %p100 = scmp.eq.s32.totalorder %s99, 0
    %s102 = sadd.s32 %s101, 1
    %s103 = scalar_select %p100, %s101, %s102
    %p106 = pneg %p100
    %p107 = scmp.eq.s32.totalorder %s9, 13
    %p108 = por %p106, %p107
    %p109 = scmp.ne.s32.totalorder %s101, %s104
    %p110 = scmp.eq.s32.totalorder %s9, 0
    %p111 = por %p109, %p110
    %p112 = scmp.ne.s32.totalorder %s101, %s104
    %p113 = scmp.eq.s32.totalorder %s14, 13
    %p114 = por %p112, %p113
    %p115 = scmp.ne.s32.totalorder %s104, %s105
    %p116 = scmp.eq.s32.totalorder %s14, 0
    %p117 = por %p115, %p116
    %p118 = scmp.ne.s32.totalorder %s104, %s105
    %p119 = scmp.eq.s32.totalorder %s15, 13
    %p120 = por %p118, %p119
    %p122 = scmp.ne.s32.totalorder %s105, %s121
    %p123 = scmp.eq.s32.totalorder %s15, 0
    %p124 = por %p122, %p123
    %p125 = scmp.le.s32.totalorder 1, %s9
    %p126 = scmp.lt.s32.totalorder %s9, 15
    %p127 = pnand %p125, %p126
    %p128 = pneg %p127
    // Predicated region
    $region9: #{a_call__.1} parent=5 // pred_check
      _
    $region10: #{a_call__.1} parent=5 // pred_check_branch
      %130 = sbr.rel (%p127) target = $region12
    $region11: #{a_call__.1} parent=5 // pred_region
      %s131 = ssub.s32 %s9, 1
      // Predicated region
      $region13: #{a_call__.1} parent=11 // pred_check
        %p132 = pneg %p68
      $region14: #{a_call__.1} parent=11 // pred_check_branch
        %134 = sbr.rel (%p132) target = $region16
      $region15: #{a_call__.1} parent=11 // pred_region
        _
      $region16: #{a_call__.1} parent=11 // pred_fallthru
        _
      // Predicated region
      $region17: #{a_call__.1} parent=11 // pred_check
        %p135 = pneg %p89
      $region18: #{a_call__.1} parent=11 // pred_check_branch
        %137 = sbr.rel (%p135) target = $region20
      $region19: #{a_call__.1} parent=11 // pred_region
        _
      $region20: #{a_call__.1} parent=11 // pred_fallthru
        _
    $region12: #{a_call__.1} parent=5 // pred_fallthru
      _
    %p138 = scmp.lt.s32.totalorder %s9, 14
    // Predicated region
    $region21: #{a_call__.1} parent=5 // pred_check
      %p139 = pneg %p138
    $region22: #{a_call__.1} parent=5 // pred_check_branch
      %141 = sbr.rel (%p139) target = $region24
    $region23: #{a_call__.1} parent=5 // pred_region
      // Predicated region
      $region25: #{a_call__.1} parent=23 // pred_check
        %p142 = pneg %p41
      $region26: #{a_call__.1} parent=23 // pred_check_branch
        %144 = sbr.rel (%p142) target = $region28
      $region27: #{a_call__.1} parent=23 // pred_region
        %p145 = scmp.lt.s32.totalorder %s16, 1
        %s146 = scalar_select %p145, %s16, 1
        %s147 = smul.addr %s146, 32
        %s148 = smul.addr %s147, 4
        %s149 = scalar_lea.vmem %s0, %s148
      $region28: #{a_call__.1} parent=23 // pred_fallthru
        _
    $region24: #{a_call__.1} parent=5 // pred_fallthru
      _
    %p150 = scmp.le.s32.totalorder 1, %s9
    %p151 = scmp.lt.s32.totalorder %s9, 15
    %p152 = pnand %p150, %p151
    %p153 = pneg %p152
    // Predicated region
    $region29: #{a_call__.1} parent=5 // pred_check
      _
    $region30: #{a_call__.1} parent=5 // pred_check_branch
      %155 = sbr.rel (%p152) target = $region32
    $region31: #{a_call__.1} parent=5 // pred_region
      %s156 = ssub.s32 %s9, 1
      %p157 = scmp.lt.s32.totalorder %s18, 1
      %s158 = scalar_select %p157, %s18, 1
      %s159 = smul.addr %s158, 32
      %s160 = smul.addr %s159, 4
      %s161 = scalar_lea.vmem %s0, %s160
      %p162 = pneg %p47
      %p163 = pneg %p44
      %p164 = pneg %p68
      %p165 = pneg %p65
      %p166 = pneg %p89
      %p167 = pneg %p86
      %p168 = pneg %p117
      %p169 = pneg %p114
      %p170 = scmp.lt.s32.totalorder %s18, 1
      %s171 = scalar_select %p170, %s18, 1
      %p172 = scmp.lt.s32.totalorder %s19, 6
      %s173 = scalar_select %p172, %s19, 6
      %s174 = smul.addr %s171, 7
      %s175 = sadd.s32 %s173, %s174
      %s176 = smul.addr %s175, 8
      %s177 = scalar_lea.vmem %s3, %s176
      %p178 = scmp.lt.s32.totalorder %s18, 1
      %s179 = scalar_select %p178, %s18, 1
      %s180 = smul.addr %s179, 32
      %s181 = smul.addr %s180, 4
      %s182 = scalar_lea.vmem %s0, %s181
      %p183 = scmp.lt.s32.totalorder %s18, 1
      %s184 = scalar_select %p183, %s18, 1
      %p185 = scmp.lt.s32.totalorder %s19, 6
      %s186 = scalar_select %p185, %s19, 6
      %s187 = smul.addr %s184, 7
      %s188 = sadd.s32 %s186, %s187
      %s189 = smul.addr %s188, 8
      %s190 = scalar_lea.vmem %s3, %s189
      %s192 = smul.addr %s19, 4
      %s193 = scalar_lea.vmem %s182, %s192
      %v194 = vld [vmem:[%s193] sm:$0xf]
      %v195 = vld [vmem:[%s1] sm:$0xf]
      %s196 = sadd.s32 %s19, 8
      %s197 = smul.addr %s196, 4
      %s198 = scalar_lea.vmem %s182, %s197
      %v199 = vld [vmem:[%s198] sm:$0xf]
      %s200 = scalar_lea.vmem %s1, 4
      %v201 = vld [vmem:[%s200] sm:$0xf]
      %vm202 = vcmask 64512
      %v204 = vsel %vm202, %v199, 0
      %vm206 = vcmask 1043456
      %v208 = vsel %vm206, %v201, 0
      %210 = vmatpush.bf16.msra.mxu0 0
      %211 = vmatpush.bf16.msra.mxu0 0
      %212 = vmatpush.bf16.msra.mxu0 0
      %213 = vmatpush.bf16.msra.mxu0 0
      %214 = vmatpush.bf16.msra.mxu0 0
      %215 = vmatpush.bf16.msra.mxu0 0
      %216 = vmatpush.bf16.msra.mxu0 0
      %217 = vmatpush.bf16.msra.mxu0 %v208
      %218 = vmatmul.bf16.gmra.mxu0 %v204
      %v219 = vpop.f32.mrf.mxu0
      %v220 = vadd.f32 0.0, %v219
      %v221 = vpop.f32.mrf.mxu0
      %222 = vdwg.mxu0
      %v224 = vsel %vm202, %v194, 0
      %v227 = vsel %vm206, %v195, 0
      %229 = vmatpush.bf16.msra.mxu0 0
      %230 = vmatpush.bf16.msra.mxu0 0
      %231 = vmatpush.bf16.msra.mxu0 0
      %232 = vmatpush.bf16.msra.mxu0 0
      %233 = vmatpush.bf16.msra.mxu0 0
      %234 = vmatpush.bf16.msra.mxu0 0
      %235 = vmatpush.bf16.msra.mxu0 0
      %236 = vmatpush.bf16.msra.mxu0 %v227
      %237 = vmatmul.bf16.gmra.mxu0 %v224
      %v238 = vpop.f32.mrf.mxu0
      %v239 = vadd.f32 %v220, %v238
      %v240 = vpop.f32.mrf.mxu0
      %241 = vdwg.mxu0
      %s242 = scalar_lea.vmem %s1, 8
      %v243 = vld [vmem:[%s242] sm:$0xf]
      %v245 = vunpack.c.l.b16 %v194
      %v246 = vpack.c.b16 %v245, %v245
      %v248 = vshrl.u32 %v246, 16
      %v250 = vshll.u32 %v246, 16
      %v252 = vrot.slane %v250, 1
      %v253 = vor.u32 %v248, %v252
      %v255 = vsel %vm202, %v253, 0
      %v258 = vsel %vm206, %v243, 0
      %260 = vmatpush.bf16.msra.mxu0 0
      %261 = vmatpush.bf16.msra.mxu0 0
      %262 = vmatpush.bf16.msra.mxu0 0
      %263 = vmatpush.bf16.msra.mxu0 0
      %264 = vmatpush.bf16.msra.mxu0 0
      %265 = vmatpush.bf16.msra.mxu0 0
      %266 = vmatpush.bf16.msra.mxu0 0
      %267 = vmatpush.bf16.msra.mxu0 %v258
      %268 = vmatmul.bf16.gmra.mxu0 %v255
      %v269 = vpop.f32.mrf.mxu0
      %v270 = vadd.f32 0.0, %v269
      %v271 = vpop.f32.mrf.mxu0
      %272 = vdwg.mxu0
      %v273 = vadd.f32 %v239, %v270
      %s274 = scalar_lea.vmem %s1, 12
      %v275 = vld [vmem:[%s274] sm:$0xf]
      %v277 = vunpack.c.l.b16 %v199
      %v278 = vpack.c.b16 %v277, %v277
      %v280 = vshrl.u32 %v278, 16
      %v282 = vshll.u32 %v278, 16
      %v284 = vrot.slane %v282, 1
      %v285 = vor.u32 %v280, %v284
      %v287 = vsel %vm202, %v285, 0
      %v290 = vsel %vm206, %v275, 0
      %292 = vmatpush.bf16.msra.mxu0 0
      %293 = vmatpush.bf16.msra.mxu0 0
      %294 = vmatpush.bf16.msra.mxu0 0
      %295 = vmatpush.bf16.msra.mxu0 0
      %296 = vmatpush.bf16.msra.mxu0 0
      %297 = vmatpush.bf16.msra.mxu0 0
      %298 = vmatpush.bf16.msra.mxu0 0
      %299 = vmatpush.bf16.msra.mxu0 %v290
      %300 = vmatmul.bf16.gmra.mxu0 %v287
      %v301 = vpop.f32.mrf.mxu0
      %v302 = vadd.f32 0.0, %v301
      %v303 = vpop.f32.mrf.mxu0
      %304 = vdwg.mxu0
      %v305 = vadd.f32 %v273, %v302
      %s306 = sadd.s32 %s19, 16
      %s307 = smul.addr %s306, 4
      %s308 = scalar_lea.vmem %s182, %s307
      %v309 = vld [vmem:[%s308] sm:$0xf]
      %s310 = scalar_lea.vmem %s1, 16
      %v311 = vld [vmem:[%s310] sm:$0xf]
      %v313 = vsel %vm202, %v309, 0
      %v316 = vsel %vm206, %v311, 0
      %318 = vmatpush.bf16.msra.mxu0 0
      %319 = vmatpush.bf16.msra.mxu0 0
      %320 = vmatpush.bf16.msra.mxu0 0
      %321 = vmatpush.bf16.msra.mxu0 0
      %322 = vmatpush.bf16.msra.mxu0 0
      %323 = vmatpush.bf16.msra.mxu0 0
      %324 = vmatpush.bf16.msra.mxu0 0
      %325 = vmatpush.bf16.msra.mxu0 %v316
      %326 = vmatmul.bf16.gmra.mxu0 %v313
      %v327 = vpop.f32.mrf.mxu0
      %v328 = vadd.f32 0.0, %v327
      %v329 = vpop.f32.mrf.mxu0
      %330 = vdwg.mxu0
      %v331 = vadd.f32 %v305, %v328
      %s332 = sadd.s32 %s19, 24
      %s333 = smul.addr %s332, 4
      %s334 = scalar_lea.vmem %s182, %s333
      %v335 = vld [vmem:[%s334] sm:$0xf]
      %s336 = scalar_lea.vmem %s1, 20
      %v337 = vld [vmem:[%s336] sm:$0xf]
      %v339 = vsel %vm202, %v335, 0
      %v342 = vsel %vm206, %v337, 0
      %344 = vmatpush.bf16.msra.mxu0 0
      %345 = vmatpush.bf16.msra.mxu0 0
      %346 = vmatpush.bf16.msra.mxu0 0
      %347 = vmatpush.bf16.msra.mxu0 0
      %348 = vmatpush.bf16.msra.mxu0 0
      %349 = vmatpush.bf16.msra.mxu0 0
      %350 = vmatpush.bf16.msra.mxu0 0
      %351 = vmatpush.bf16.msra.mxu0 %v342
      %352 = vmatmul.bf16.gmra.mxu0 %v339
      %v353 = vpop.f32.mrf.mxu0
      %v354 = vadd.f32 0.0, %v353
      %v355 = vpop.f32.mrf.mxu0
      %356 = vdwg.mxu0
      %v357 = vadd.f32 %v331, %v354
      %s358 = scalar_lea.vmem %s1, 24
      %v359 = vld [vmem:[%s358] sm:$0xf]
      %v361 = vunpack.c.l.b16 %v309
      %v362 = vpack.c.b16 %v361, %v361
      %v364 = vshrl.u32 %v362, 16
      %v366 = vshll.u32 %v362, 16
      %v368 = vrot.slane %v366, 1
      %v369 = vor.u32 %v364, %v368
      %v371 = vsel %vm202, %v369, 0
      %v374 = vsel %vm206, %v359, 0
      %376 = vmatpush.bf16.msra.mxu0 0
      %377 = vmatpush.bf16.msra.mxu0 0
      %378 = vmatpush.bf16.msra.mxu0 0
      %379 = vmatpush.bf16.msra.mxu0 0
      %380 = vmatpush.bf16.msra.mxu0 0
      %381 = vmatpush.bf16.msra.mxu0 0
      %382 = vmatpush.bf16.msra.mxu0 0
      %383 = vmatpush.bf16.msra.mxu0 %v374
      %384 = vmatmul.bf16.gmra.mxu0 %v371
      %v385 = vpop.f32.mrf.mxu0
      %v386 = vadd.f32 0.0, %v385
      %v387 = vpop.f32.mrf.mxu0
      %388 = vdwg.mxu0
      %v389 = vadd.f32 %v357, %v386
      %s390 = scalar_lea.vmem %s1, 28
      %v391 = vld [vmem:[%s390] sm:$0xf]
      %v393 = vunpack.c.l.b16 %v335
      %v394 = vpack.c.b16 %v393, %v393
      %v396 = vshrl.u32 %v394, 16
      %v398 = vshll.u32 %v394, 16
      %v400 = vrot.slane %v398, 1
      %v401 = vor.u32 %v396, %v400
      %v403 = vsel %vm202, %v401, 0
      %v406 = vsel %vm206, %v391, 0
      %408 = vmatpush.bf16.msra.mxu0 0
      %409 = vmatpush.bf16.msra.mxu0 0
      %410 = vmatpush.bf16.msra.mxu0 0
      %411 = vmatpush.bf16.msra.mxu0 0
      %412 = vmatpush.bf16.msra.mxu0 0
      %413 = vmatpush.bf16.msra.mxu0 0
      %414 = vmatpush.bf16.msra.mxu0 0
      %415 = vmatpush.bf16.msra.mxu0 %v406
      %416 = vmatmul.bf16.gmra.mxu0 %v403
      %v417 = vpop.f32.mrf.mxu0
      %v418 = vadd.f32 0.0, %v417
      %v419 = vpop.f32.mrf.mxu0
      %420 = vdwg.mxu0
      %v421 = vadd.f32 %v389, %v418
      %s422 = sadd.s32 %s19, 1
      %s423 = smul.addr %s422, 4
      %s424 = scalar_lea.vmem %s182, %s423
      %v425 = vld [vmem:[%s424] sm:$0xf]
      %s426 = scalar_lea.vmem %s1, 32
      %v427 = vld [vmem:[%s426] sm:$0xf]
      %v429 = vsel %vm202, %v425, 0
      %v432 = vsel %vm206, %v427, 0
      %434 = vmatpush.bf16.msra.mxu0 0
      %435 = vmatpush.bf16.msra.mxu0 0
      %436 = vmatpush.bf16.msra.mxu0 0
      %437 = vmatpush.bf16.msra.mxu0 0
      %438 = vmatpush.bf16.msra.mxu0 0
      %439 = vmatpush.bf16.msra.mxu0 0
      %440 = vmatpush.bf16.msra.mxu0 0
      %441 = vmatpush.bf16.msra.mxu0 %v432
      %442 = vmatmul.bf16.gmra.mxu0 %v429
      %v443 = vpop.f32.mrf.mxu0
      %v444 = vadd.f32 0.0, %v443
      %v445 = vpop.f32.mrf.mxu0
      %446 = vdwg.mxu0
      %v447 = vadd.f32 %v421, %v444
      %s448 = sadd.s32 %s422, 8
      %s449 = smul.addr %s448, 4
      %s450 = scalar_lea.vmem %s182, %s449
      %v451 = vld [vmem:[%s450] sm:$0xf]
      %s452 = scalar_lea.vmem %s1, 36
      %v453 = vld [vmem:[%s452] sm:$0xf]
      %v455 = vsel %vm202, %v451, 0
      %v458 = vsel %vm206, %v453, 0
      %460 = vmatpush.bf16.msra.mxu0 0
      %461 = vmatpush.bf16.msra.mxu0 0
      %462 = vmatpush.bf16.msra.mxu0 0
      %463 = vmatpush.bf16.msra.mxu0 0
      %464 = vmatpush.bf16.msra.mxu0 0
      %465 = vmatpush.bf16.msra.mxu0 0
      %466 = vmatpush.bf16.msra.mxu0 0
      %467 = vmatpush.bf16.msra.mxu0 %v458
      %468 = vmatmul.bf16.gmra.mxu0 %v455
      %v469 = vpop.f32.mrf.mxu0
      %v470 = vadd.f32 0.0, %v469
      %v471 = vpop.f32.mrf.mxu0
      %472 = vdwg.mxu0
      %v473 = vadd.f32 %v447, %v470
      %s474 = scalar_lea.vmem %s1, 40
      %v475 = vld [vmem:[%s474] sm:$0xf]
      %v477 = vunpack.c.l.b16 %v425
      %v478 = vpack.c.b16 %v477, %v477
      %v480 = vshrl.u32 %v478, 16
      %v482 = vshll.u32 %v478, 16
      %v484 = vrot.slane %v482, 1
      %v485 = vor.u32 %v480, %v484
      %v487 = vsel %vm202, %v485, 0
      %v490 = vsel %vm206, %v475, 0
      %492 = vmatpush.bf16.msra.mxu0 0
      %493 = vmatpush.bf16.msra.mxu0 0
      %494 = vmatpush.bf16.msra.mxu0 0
      %495 = vmatpush.bf16.msra.mxu0 0
      %496 = vmatpush.bf16.msra.mxu0 0
      %497 = vmatpush.bf16.msra.mxu0 0
      %498 = vmatpush.bf16.msra.mxu0 0
      %499 = vmatpush.bf16.msra.mxu0 %v490
      %500 = vmatmul.bf16.gmra.mxu0 %v487
      %v501 = vpop.f32.mrf.mxu0
      %v502 = vadd.f32 0.0, %v501
      %v503 = vpop.f32.mrf.mxu0
      %504 = vdwg.mxu0
      %v505 = vadd.f32 %v473, %v502
      %s506 = scalar_lea.vmem %s1, 44
      %v507 = vld [vmem:[%s506] sm:$0xf]
      %v509 = vunpack.c.l.b16 %v451
      %v510 = vpack.c.b16 %v509, %v509
      %v512 = vshrl.u32 %v510, 16
      %v514 = vshll.u32 %v510, 16
      %v516 = vrot.slane %v514, 1
      %v517 = vor.u32 %v512, %v516
      %v519 = vsel %vm202, %v517, 0
      %v522 = vsel %vm206, %v507, 0
      %524 = vmatpush.bf16.msra.mxu0 0
      %525 = vmatpush.bf16.msra.mxu0 0
      %526 = vmatpush.bf16.msra.mxu0 0
      %527 = vmatpush.bf16.msra.mxu0 0
      %528 = vmatpush.bf16.msra.mxu0 0
      %529 = vmatpush.bf16.msra.mxu0 0
      %530 = vmatpush.bf16.msra.mxu0 0
      %531 = vmatpush.bf16.msra.mxu0 %v522
      %532 = vmatmul.bf16.gmra.mxu0 %v519
      %v533 = vpop.f32.mrf.mxu0
      %v534 = vadd.f32 0.0, %v533
      %v535 = vpop.f32.mrf.mxu0
      %536 = vdwg.mxu0
      %v537 = vadd.f32 %v505, %v534
      %s538 = sadd.s32 %s422, 16
      %s539 = smul.addr %s538, 4
      %s540 = scalar_lea.vmem %s182, %s539
      %v541 = vld [vmem:[%s540] sm:$0xf]
      %s542 = scalar_lea.vmem %s1, 48
      %v543 = vld [vmem:[%s542] sm:$0xf]
      %v545 = vsel %vm202, %v541, 0
      %v548 = vsel %vm206, %v543, 0
      %550 = vmatpush.bf16.msra.mxu0 0
      %551 = vmatpush.bf16.msra.mxu0 0
      %552 = vmatpush.bf16.msra.mxu0 0
      %553 = vmatpush.bf16.msra.mxu0 0
      %554 = vmatpush.bf16.msra.mxu0 0
      %555 = vmatpush.bf16.msra.mxu0 0
      %556 = vmatpush.bf16.msra.mxu0 0
      %557 = vmatpush.bf16.msra.mxu0 %v548
      %558 = vmatmul.bf16.gmra.mxu0 %v545
      %v559 = vpop.f32.mrf.mxu0
      %v560 = vadd.f32 0.0, %v559
      %v561 = vpop.f32.mrf.mxu0
      %562 = vdwg.mxu0
      %v563 = vadd.f32 %v537, %v560
      %s564 = sadd.s32 %s422, 24
      %s565 = smul.addr %s564, 4
      %s566 = scalar_lea.vmem %s182, %s565
      %v567 = vld [vmem:[%s566] sm:$0xf]
      %s568 = scalar_lea.vmem %s1, 52
      %v569 = vld [vmem:[%s568] sm:$0xf]
      %v571 = vsel %vm202, %v567, 0
      %v574 = vsel %vm206, %v569, 0
      %576 = vmatpush.bf16.msra.mxu0 0
      %577 = vmatpush.bf16.msra.mxu0 0
      %578 = vmatpush.bf16.msra.mxu0 0
      %579 = vmatpush.bf16.msra.mxu0 0
      %580 = vmatpush.bf16.msra.mxu0 0
      %581 = vmatpush.bf16.msra.mxu0 0
      %582 = vmatpush.bf16.msra.mxu0 0
      %583 = vmatpush.bf16.msra.mxu0 %v574
      %584 = vmatmul.bf16.gmra.mxu0 %v571
      %v585 = vpop.f32.mrf.mxu0
      %v586 = vadd.f32 0.0, %v585
      %v587 = vpop.f32.mrf.mxu0
      %588 = vdwg.mxu0
      %v589 = vadd.f32 %v563, %v586
      %s590 = scalar_lea.vmem %s1, 56
      %v591 = vld [vmem:[%s590] sm:$0xf]
      %v593 = vunpack.c.l.b16 %v541
      %v594 = vpack.c.b16 %v593, %v593
      %v596 = vshrl.u32 %v594, 16
      %v598 = vshll.u32 %v594, 16
      %v600 = vrot.slane %v598, 1
      %v601 = vor.u32 %v596, %v600
      %v603 = vsel %vm202, %v601, 0
      %v606 = vsel %vm206, %v591, 0
      %608 = vmatpush.bf16.msra.mxu0 0
      %609 = vmatpush.bf16.msra.mxu0 0
      %610 = vmatpush.bf16.msra.mxu0 0
      %611 = vmatpush.bf16.msra.mxu0 0
      %612 = vmatpush.bf16.msra.mxu0 0
      %613 = vmatpush.bf16.msra.mxu0 0
      %614 = vmatpush.bf16.msra.mxu0 0
      %615 = vmatpush.bf16.msra.mxu0 %v606
      %616 = vmatmul.bf16.gmra.mxu0 %v603
      %v617 = vpop.f32.mrf.mxu0
      %v618 = vadd.f32 0.0, %v617
      %v619 = vpop.f32.mrf.mxu0
      %620 = vdwg.mxu0
      %v621 = vadd.f32 %v589, %v618
      %s622 = scalar_lea.vmem %s1, 60
      %v623 = vld [vmem:[%s622] sm:$0xf]
      %v625 = vunpack.c.l.b16 %v567
      %v626 = vpack.c.b16 %v625, %v625
      %v628 = vshrl.u32 %v626, 16
      %v630 = vshll.u32 %v626, 16
      %v632 = vrot.slane %v630, 1
      %v633 = vor.u32 %v628, %v632
      %v635 = vsel %vm202, %v633, 0
      %v638 = vsel %vm206, %v623, 0
      %640 = vmatpush.bf16.msra.mxu0 0
      %641 = vmatpush.bf16.msra.mxu0 0
      %642 = vmatpush.bf16.msra.mxu0 0
      %643 = vmatpush.bf16.msra.mxu0 0
      %644 = vmatpush.bf16.msra.mxu0 0
      %645 = vmatpush.bf16.msra.mxu0 0
      %646 = vmatpush.bf16.msra.mxu0 0
      %647 = vmatpush.bf16.msra.mxu0 %v638
      %648 = vmatmul.bf16.gmra.mxu0 %v635
      %v649 = vpop.f32.mrf.mxu0
      %v650 = vadd.f32 0.0, %v649
      %v651 = vpop.f32.mrf.mxu0
      %652 = vdwg.mxu0
      %v653 = vadd.f32 %v621, %v650
      %v654 = vld [vmem:[%s2] sm:$0x1]
      %v656 = vperm.slane %v654, 0
      %v658 = vadd.f32 %v653, %v656
      %659 = vst [vmem:[%s190] sm:$0x7f] %v658
      %p660 = scmp.lt.s32.totalorder %s18, 1
      %s661 = scalar_select %p660, %s18, 1
      %p662 = scmp.lt.s32.totalorder %s19, 6
      %s663 = scalar_select %p662, %s19, 6
      %s664 = smul.addr %s661, 7
      %s665 = sadd.s32 %s663, %s664
      %s666 = smul.addr %s665, 8
      %s667 = scalar_lea.vmem %s3, %s666
      // Predicated region
      $region33: #{a_call__.1} parent=31 // pred_check
        %p668 = pneg %p114
      $region34: #{a_call__.1} parent=31 // pred_check_branch
        %670 = sbr.rel (%p668) target = $region36
      $region35: #{a_call__.1} parent=31 // pred_region
        _
      $region36: #{a_call__.1} parent=31 // pred_fallthru
        _
    $region32: #{a_call__.1} parent=5 // pred_fallthru
      _
    %p671 = scmp.le.s32.totalorder 2, %s9
    // Predicated region
    $region37: #{a_call__.1} parent=5 // pred_check
      %p672 = pneg %p671
    $region38: #{a_call__.1} parent=5 // pred_check_branch
      %674 = sbr.rel (%p672) target = $region40
    $region39: #{a_call__.1} parent=5 // pred_region
      %s675 = ssub.s32 %s9, 2
      // Predicated region
      $region41: #{a_call__.1} parent=39 // pred_check
        %p676 = pneg %p120
      $region42: #{a_call__.1} parent=39 // pred_check_branch
        %678 = sbr.rel (%p676) target = $region44
      $region43: #{a_call__.1} parent=39 // pred_region
        %p679 = scmp.lt.s32.totalorder %s20, 1
        %s680 = scalar_select %p679, %s20, 1
        %p681 = scmp.lt.s32.totalorder %s21, 6
        %s682 = scalar_select %p681, %s21, 6
        %s683 = smul.addr %s680, 7
        %s684 = sadd.s32 %s682, %s683
        %s685 = smul.addr %s684, 8
        %s686 = scalar_lea.vmem %s3, %s685
      $region44: #{a_call__.1} parent=39 // pred_fallthru
        _
    $region40: #{a_call__.1} parent=5 // pred_fallthru
      _
  $region6: #{a_call__.1} parent=0 // loop_footer
    %s13 = sadd.s32 1, %s9
  $region7: #{a_call__.1} parent=0 // loop_footer_branch
    %8 = sbr.rel target = $region3
  $region8: #{a_call__.1} parent=0 // loop_exit
    _

</llo_original>
